<compile_context>
chip_gen: v6e
topology: v6e:2x2x1
jax: 0.10.0
libtpu: 0.0.40
codegen_flags: <defaults>
</compile_context>

<pallas_src>
import numpy as np
import jax
import jax.numpy as jnp
from jax.experimental import pallas as pl
from jax.experimental.pallas import tpu as pltpu

EPS = 100.0


def _round_up(x, m):
    return ((x + m - 1) // m) * m


def _fanin_init(key, out_features, in_features):
    # Mirrors fanin_init(weight.size()) where fanin = size[0] = out_features.
    v = 1.0 / np.sqrt(out_features)
    return jax.random.uniform(
        key, (out_features, in_features), jnp.float32, minval=-v, maxval=v
    )


def _torch_linear_bias_init(key, out_features, in_features):
    # PyTorch default Linear bias init: U(-1/sqrt(fan_in), 1/sqrt(fan_in)).
    bound = 1.0 / np.sqrt(in_features)
    return jax.random.uniform(
        key, (out_features, 1), jnp.float32, minval=-bound, maxval=bound
    )


def actor_kernel(x_ref, w1_ref, b1_ref, w2_ref, b2_ref, w4_ref, b4_ref, o_ref):
    x = x_ref[...]                                                    # [S, Tn]
    h1 = jnp.dot(w1_ref[...], x, preferred_element_type=jnp.float32) + b1_ref[...]
    h1 = jnp.maximum(h1, 0.0)                                         # relu(fc1): [8, Tn]
    h2 = jnp.dot(w2_ref[...], h1, preferred_element_type=jnp.float32) + b2_ref[...]
    h2 = jnp.maximum(h2, 0.0)                                         # relu(fc2): [4, Tn]
    logits = jnp.dot(w4_ref[...], h2, preferred_element_type=jnp.float32) + b4_ref[...]
    o_ref[...] = jax.nn.sigmoid(logits)                               # sigmoid(fc4): [1, Tn]


def actor_forward(state, params, tile_n=1024):
    """state: [n, state_dim] float32 -> action: [n, 1] float32."""
    n, state_dim = state.shape
    w1, b1, w2, b2, w4, b4 = params

    # Lane-aligned batch tile; shrink for small batches, cap at tile_n.
    tile = min(tile_n, _round_up(n, 128))
    n_pad = _round_up(n, tile)

    x = state.T                                    # [state_dim, n] -> batch on lanes
    if n_pad != n:
        x = jnp.pad(x, ((0, 0), (0, n_pad - n)))   # zero-pad: harmless, sliced off below

    out = pl.pallas_call(
        actor_kernel,
        out_shape=jax.ShapeDtypeStruct((1, n_pad), jnp.float32),
        grid=(n_pad // tile,),
        in_specs=[
            pl.BlockSpec((state_dim, tile), lambda i: (0, i)),   # x tiled on batch
            pl.BlockSpec((8, state_dim), lambda i: (0, 0)),      # w1 resident
            pl.BlockSpec((8, 1), lambda i: (0, 0)),              # b1 resident
            pl.BlockSpec((4, 8), lambda i: (0, 0)),              # w2 resident
            pl.BlockSpec((4, 1), lambda i: (0, 0)),              # b2 resident
            pl.BlockSpec((1, 4), lambda i: (0, 0)),              # w4 resident
            pl.BlockSpec((1, 1), lambda i: (0, 0)),              # b4 resident
        ],
        out_specs=pl.BlockSpec((1, tile), lambda i: (0, i)),
        compiler_params=pltpu.CompilerParams(
            dimension_semantics=("parallel",)),                  # v7x: shard batch over 2 TCs
    )(x, w1, b1, w2, b2, w4, b4)

    return out[:, :n].T                            # back to [n, 1]


def init_actor_params(key, state_dim):
    k = jax.random.split(key, 6)
    # fc1: state_dim -> 8 (fanin_init weights), stored [out, in]
    w1 = _fanin_init(k[0], 8, state_dim)
    b1 = _torch_linear_bias_init(k[1], 8, state_dim)
    # fc2: 8 -> 4 (fanin_init weights)
    w2 = _fanin_init(k[2], 4, 8)
    b2 = _torch_linear_bias_init(k[3], 4, 8)
    # fc3 exists in the torch module but is never used in forward() -> omitted.
    # fc4: 4 -> 1, weights U(-EPS, EPS)
    w4 = jax.random.uniform(k[4], (1, 4), jnp.float32, minval=-EPS, maxval=EPS)
    b4 = _torch_linear_bias_init(k[5], 1, 4)
    return (w1, b1, w2, b2, w4, b4)


def actor_reference(state, params):
    w1, b1, w2, b2, w4, b4 = params
    h1 = jnp.maximum(state @ w1.T + b1.T, 0.0)
    h2 = jnp.maximum(h1 @ w2.T + b2.T, 0.0)
    return jax.nn.sigmoid(h2 @ w4.T + b4.T)


if __name__ == "__main__":
    key = jax.random.PRNGKey(0)
    k_param, k_state, k_state2 = jax.random.split(key, 3)

    batch, state_dim, action_dim = 4, 16, 1
    params = init_actor_params(k_param, state_dim)
    state = jax.random.normal(k_state, (batch, state_dim), jnp.float32)

    out = actor_forward(state, params)
    out = jax.block_until_ready(out)
    ref = actor_reference(state, params)
    assert out.shape == (batch, action_dim), out.shape
    np.testing.assert_allclose(np.asarray(out), np.asarray(ref), rtol=1e-5, atol=1e-5)

    # Larger, non-multiple-of-128 batch to exercise the grid + padding path.
    big_batch = 2500
    state2 = jax.random.normal(k_state2, (big_batch, state_dim), jnp.float32)
    out2 = jax.block_until_ready(actor_forward(state2, params))
    ref2 = actor_reference(state2, params)
    assert out2.shape == (big_batch, action_dim), out2.shape
    np.testing.assert_allclose(np.asarray(out2), np.asarray(ref2), rtol=1e-5, atol=1e-5)

    print("KERNEL_OK")
</pallas_src>

<mosaic_0001>
module attributes {stable_mosaic.version = 11 : i64} {
  func.func @actor_kernel(%arg0: i32, %arg1: memref<16x128xf32, #tpu.memory_space<vmem>>, %arg2: memref<8x16xf32, #tpu.memory_space<vmem>>, %arg3: memref<8x1xf32, #tpu.memory_space<vmem>>, %arg4: memref<4x8xf32, #tpu.memory_space<vmem>>, %arg5: memref<4x1xf32, #tpu.memory_space<vmem>>, %arg6: memref<1x4xf32, #tpu.memory_space<vmem>>, %arg7: memref<1x1xf32, #tpu.memory_space<vmem>>, %arg8: memref<1x128xf32, #tpu.memory_space<vmem>>) attributes {dimension_semantics = [#tpu.dimension_semantics<parallel>], iteration_bounds = array<i64: 1>, scalar_prefetch = 0 : i64, scratch_operands = 0 : i64, tpu.core_type = #tpu.core_type<tc>, window_params = [{transform_indices = @transform_0, window_bounds = array<i64: 16, 128>}, {pipeline_mode = #tpu.pipeline_mode<synchronous>, transform_indices = @transform_1, window_bounds = array<i64: 8, 16>}, {pipeline_mode = #tpu.pipeline_mode<synchronous>, transform_indices = @transform_2, window_bounds = array<i64: 8, 1>}, {pipeline_mode = #tpu.pipeline_mode<synchronous>, transform_indices = @transform_3, window_bounds = array<i64: 4, 8>}, {pipeline_mode = #tpu.pipeline_mode<synchronous>, transform_indices = @transform_4, window_bounds = array<i64: 4, 1>}, {pipeline_mode = #tpu.pipeline_mode<synchronous>, transform_indices = @transform_5, window_bounds = array<i64: 1, 4>}, {pipeline_mode = #tpu.pipeline_mode<synchronous>, transform_indices = @transform_6, window_bounds = array<i64: 1, 1>}, {transform_indices = @transform_7, window_bounds = array<i64: 1, 128>}]} {
    %c0 = arith.constant 0 : index
    %c0_0 = arith.constant 0 : index
    %0 = vector.load %arg1[%c0, %c0_0] : memref<16x128xf32, #tpu.memory_space<vmem>>, vector<16x128xf32>
    %c0_1 = arith.constant 0 : index
    %c0_2 = arith.constant 0 : index
    %1 = vector.load %arg2[%c0_1, %c0_2] : memref<8x16xf32, #tpu.memory_space<vmem>>, vector<8x16xf32>
    %cst = arith.constant dense<0.000000e+00> : vector<8x128xf32>
    %2 = tpu.matmul %1, %0, %cst {dimension_numbers = #tpu.dot_dimension_numbers<[1], [0], [0], [1], [0, 0, 1, 1], [], []>} : vector<8x16xf32>, vector<16x128xf32>, vector<8x128xf32> -> vector<8x128xf32>
    %c0_3 = arith.constant 0 : index
    %c0_4 = arith.constant 0 : index
    %3 = vector.load %arg3[%c0_3, %c0_4] : memref<8x1xf32, #tpu.memory_space<vmem>>, vector<8x1xf32>
    %4 = vector.broadcast %3 : vector<8x1xf32> to vector<8x128xf32>
    %5 = arith.addf %2, %4 : vector<8x128xf32>
    %cst_5 = arith.constant 0.000000e+00 : f32
    %6 = vector.broadcast %cst_5 : f32 to vector<8x128xf32>
    %7 = arith.maximumf %5, %6 : vector<8x128xf32>
    %c0_6 = arith.constant 0 : index
    %c0_7 = arith.constant 0 : index
    %8 = vector.load %arg4[%c0_6, %c0_7] : memref<4x8xf32, #tpu.memory_space<vmem>>, vector<4x8xf32>
    %cst_8 = arith.constant dense<0.000000e+00> : vector<4x128xf32>
    %9 = tpu.matmul %8, %7, %cst_8 {dimension_numbers = #tpu.dot_dimension_numbers<[1], [0], [0], [1], [0, 0, 1, 1], [], []>} : vector<4x8xf32>, vector<8x128xf32>, vector<4x128xf32> -> vector<4x128xf32>
    %c0_9 = arith.constant 0 : index
    %c0_10 = arith.constant 0 : index
    %10 = vector.load %arg5[%c0_9, %c0_10] : memref<4x1xf32, #tpu.memory_space<vmem>>, vector<4x1xf32>
    %11 = vector.broadcast %10 : vector<4x1xf32> to vector<4x128xf32>
    %12 = arith.addf %9, %11 : vector<4x128xf32>
    %cst_11 = arith.constant 0.000000e+00 : f32
    %13 = vector.broadcast %cst_11 : f32 to vector<4x128xf32>
    %14 = arith.maximumf %12, %13 : vector<4x128xf32>
    %c0_12 = arith.constant 0 : index
    %c0_13 = arith.constant 0 : index
    %15 = vector.load %arg6[%c0_12, %c0_13] : memref<1x4xf32, #tpu.memory_space<vmem>>, vector<1x4xf32>
    %cst_14 = arith.constant dense<0.000000e+00> : vector<1x128xf32>
    %16 = tpu.matmul %15, %14, %cst_14 {dimension_numbers = #tpu.dot_dimension_numbers<[1], [0], [0], [1], [0, 0, 1, 1], [], []>} : vector<1x4xf32>, vector<4x128xf32>, vector<1x128xf32> -> vector<1x128xf32>
    %c0_15 = arith.constant 0 : index
    %c0_16 = arith.constant 0 : index
    %17 = vector.load %arg7[%c0_15, %c0_16] : memref<1x1xf32, #tpu.memory_space<vmem>>, vector<1x1xf32>
    %18 = vector.broadcast %17 : vector<1x1xf32> to vector<1x128xf32>
    %19 = arith.addf %16, %18 : vector<1x128xf32>
    %20 = arith.negf %19 : vector<1x128xf32>
    %21 = math.exp %20 : vector<1x128xf32>
    %cst_17 = arith.constant 1.000000e+00 : f32
    %22 = vector.broadcast %cst_17 : f32 to vector<1x128xf32>
    %23 = arith.addf %22, %21 : vector<1x128xf32>
    %24 = arith.divf %22, %23 : vector<1x128xf32>
    %c0_18 = arith.constant 0 : index
    %c0_19 = arith.constant 0 : index
    %25 = vector.load %arg8[%c0_18, %c0_19] : memref<1x128xf32, #tpu.memory_space<vmem>>, vector<1x128xf32>
    tpu.vector_store %arg8[%c0_18, %c0_19], %24 {strides = array<i32>} : memref<1x128xf32, #tpu.memory_space<vmem>>, vector<1x128xf32>,
    return
  }
  func.func @transform_0(%arg0: i32) -> (i32, i32) {
    %c0_i32 = arith.constant 0 : i32
    %c0_i32_0 = arith.constant 0 : i32
    return %c0_i32, %arg0 : i32, i32
  }
  func.func @transform_1(%arg0: i32) -> (i32, i32) {
    %c0_i32 = arith.constant 0 : i32
    %c0_i32_0 = arith.constant 0 : i32
    %c0_i32_1 = arith.constant 0 : i32
    return %c0_i32, %c0_i32_0 : i32, i32
  }
  func.func @transform_2(%arg0: i32) -> (i32, i32) {
    %c0_i32 = arith.constant 0 : i32
    %c0_i32_0 = arith.constant 0 : i32
    %c0_i32_1 = arith.constant 0 : i32
    return %c0_i32, %c0_i32_0 : i32, i32
  }
  func.func @transform_3(%arg0: i32) -> (i32, i32) {
    %c0_i32 = arith.constant 0 : i32
    %c0_i32_0 = arith.constant 0 : i32
    %c0_i32_1 = arith.constant 0 : i32
    return %c0_i32, %c0_i32_0 : i32, i32
  }
  func.func @transform_4(%arg0: i32) -> (i32, i32) {
    %c0_i32 = arith.constant 0 : i32
    %c0_i32_0 = arith.constant 0 : i32
    %c0_i32_1 = arith.constant 0 : i32
    return %c0_i32, %c0_i32_0 : i32, i32
  }
  func.func @transform_5(%arg0: i32) -> (i32, i32) {
    %c0_i32 = arith.constant 0 : i32
    %c0_i32_0 = arith.constant 0 : i32
    %c0_i32_1 = arith.constant 0 : i32
    return %c0_i32, %c0_i32_0 : i32, i32
  }
  func.func @transform_6(%arg0: i32) -> (i32, i32) {
    %c0_i32 = arith.constant 0 : i32
    %c0_i32_0 = arith.constant 0 : i32
    %c0_i32_1 = arith.constant 0 : i32
    return %c0_i32, %c0_i32_0 : i32, i32
  }
  func.func @transform_7(%arg0: i32) -> (i32, i32) {
    %c0_i32 = arith.constant 0 : i32
    %c0_i32_0 = arith.constant 0 : i32
    return %c0_i32, %arg0 : i32, i32
  }
}

</mosaic_0001>

<llo_original>
// kernel: tpu_custom_call.1
$region0: #{tpu_custom_call.1}
  #allocation0 [shape = 'u32[]', space=smem, size = 0x4, offset = 0x4, fixed_abs, tag = 'smem constant byte address 0x4 - core index']
  #allocation1 [shape = 'u32[144,128]{1,0:T(1,128)}', space=vmem, size = 0x12000, scoped, tag = 'internal scratch']
  #allocation2 [shape = 'f32[1,1]{1,0:T(1,128)S(1)}', space=vmem, size = 0x200, scoped, tag = 'scoped memory for tpu_custom_call.1']
  %s0 = inlined_call_operand.vmem [shape: f32[16,128], index: 0, kind: input, shape index: {}]
  %s1 = inlined_call_operand.hbm [shape: f32[8,16], index: 1, kind: input, shape index: {}]
  %s2 = inlined_call_operand.vmem [shape: f32[8,1], index: 2, kind: input, shape index: {}]
  %s3 = inlined_call_operand.vmem [shape: f32[4,8], index: 3, kind: input, shape index: {}]
  %s4 = inlined_call_operand.vmem [shape: f32[4,1], index: 4, kind: input, shape index: {}]
  %s5 = inlined_call_operand.vmem [shape: f32[1,4], index: 5, kind: input, shape index: {}]
  %s6 = inlined_call_operand.<no memory space> [shape: f32[1,1], index: 6, kind: input, shape index: {}]
  %s7 = inlined_call_operand.hbm [shape: f32[1,128], index: 7, kind: output, shape index: {}]
  %s8 = sld [smem:[#allocation0]]
  $region42: #{tpu_custom_call.1} parent=0
    _
  %s10 = ssub.s32 1, %s8
  %s11 = scalar_select 0, %s10, %s8
  %v12 = vstv %s6
  %13 = vst [vmem:[#allocation2] sm:$0x1] %v12
  $region1: #{tpu_custom_call.1} parent=0
    #allocation3 [shape = 'u8[4096]{0}', space=vmem, size = 0x1000, scoped, tag = 'input window, operand 1, single buffered']
    #allocation4 [shape = 's32[1]{0}', space=sflag, size = 0x4, scoped, tag = 'scoped memory for tpu_custom_call.1']
    #allocation5 [shape = 's32[1]{0}', space=sflag, size = 0x4, scoped, tag = 'scoped memory for tpu_custom_call.1']
    #allocation6 [shape = 'u8[512]{0}', space=vmem, size = 0x400, scoped, tag = 'output window, operand 0, single buffered']
    %14 = vsyncpa [#allocation4], 0
    %15 = vsyncpa [#allocation5], 0
    // Predicated region
    $region2: #{tpu_custom_call.1} parent=1 // pred_check
      _
    $region3: #{tpu_custom_call.1} parent=1 // pred_check_branch
      %17 = sbr.rel (0) target = $region5
    $region4: #{tpu_custom_call.1} parent=1 // pred_region
      _
    $region5: #{tpu_custom_call.1} parent=1 // pred_fallthru
      _
    // Predicated region
    $region6: #{tpu_custom_call.1} parent=1 // pred_check
      _
    $region7: #{tpu_custom_call.1} parent=1 // pred_check_branch
      %19 = sbr.rel (0) target = $region9
    $region8: #{tpu_custom_call.1} parent=1 // pred_region
      %s21 = ssub.s32 128, 128
      %22 = vsyncadd [#allocation4], %s21
      %s24 = sshll.u32 [#allocation3], 4
      %s25 = int_to_ptr.vmem [resolvable:$true] %s24
      %27 = dma.hbm_to_vmem [thread:$0]  %s1, 128, %s25, [#allocation4]
    $region9: #{tpu_custom_call.1} parent=1 // pred_fallthru
      _
    // Predicated region
    $region10: #{tpu_custom_call.1} parent=1 // pred_check
      _
    $region11: #{tpu_custom_call.1} parent=1 // pred_check_branch
      %29 = sbr.rel (0) target = $region13
    $region12: #{tpu_custom_call.1} parent=1 // pred_region
      _
    $region13: #{tpu_custom_call.1} parent=1 // pred_fallthru
      _
    // Predicated region
    $region14: #{tpu_custom_call.1} parent=1 // pred_check
      _
    $region15: #{tpu_custom_call.1} parent=1 // pred_check_branch
      %31 = sbr.rel (0) target = $region17
    $region16: #{tpu_custom_call.1} parent=1 // pred_region
      _
    $region17: #{tpu_custom_call.1} parent=1 // pred_fallthru
      _
    // Predicated region
    $region18: #{tpu_custom_call.1} parent=1 // pred_check
      _
    $region19: #{tpu_custom_call.1} parent=1 // pred_check_branch
      %33 = sbr.rel (0) target = $region21
    $region20: #{tpu_custom_call.1} parent=1 // pred_region
      _
    $region21: #{tpu_custom_call.1} parent=1 // pred_fallthru
      _
    // Predicated region
    $region22: #{tpu_custom_call.1} parent=1 // pred_check
      _
    $region23: #{tpu_custom_call.1} parent=1 // pred_check_branch
      %35 = sbr.rel (0) target = $region25
    $region24: #{tpu_custom_call.1} parent=1 // pred_region
      _
    $region25: #{tpu_custom_call.1} parent=1 // pred_fallthru
      _
    // Predicated region
    $region26: #{tpu_custom_call.1} parent=1 // pred_check
      _
    $region27: #{tpu_custom_call.1} parent=1 // pred_check_branch
      %37 = sbr.rel (0) target = $region29
    $region28: #{tpu_custom_call.1} parent=1 // pred_region
      _
    $region29: #{tpu_custom_call.1} parent=1 // pred_fallthru
      _
    // Predicated region
    $region30: #{tpu_custom_call.1} parent=1 // pred_check
      _
    $region31: #{tpu_custom_call.1} parent=1 // pred_check_branch
      %39 = sbr.rel (0) target = $region33
    $region32: #{tpu_custom_call.1} parent=1 // pred_region
      %40 = dma.done [#allocation4], 128
    $region33: #{tpu_custom_call.1} parent=1 // pred_fallthru
      _
    %v41 = vld [vmem:[%s0] sm:$0xff]
    %v42 = vld [vmem:[%s0 + $0x8] sm:$0xff]
    %v43 = vld [vmem:[#allocation3] sm:$0xff]
    %v44 = vld [vmem:[%s2] sm:$0xff]
    %46 = vset.pattern.permute.xlu0 0
    %47 = vperm.xlu0 %46, %v44
    %v48 = vpop.permute.xlu0 %47
    %vm50 = vcmask 130048
    %v52 = vsel %vm50, %v43, 0
    %54 = vmatprep.subr.mxu0 0.0
    %55 = vmatpush1.msra.mxu0 0.0
    %56 = vmatprep.subr.mxu0 0.0
    %57 = vmatpush1.msra.mxu0 0.0
    %58 = vmatprep.subr.mxu0 0.0
    %59 = vmatpush1.msra.mxu0 0.0
    %60 = vmatprep.subr.mxu0 0.0
    %61 = vmatpush1.msra.mxu0 0.0
    %62 = vmatprep.subr.mxu0 0.0
    %63 = vmatpush1.msra.mxu0 0.0
    %64 = vmatprep.subr.mxu0 0.0
    %65 = vmatpush1.msra.mxu0 0.0
    %66 = vmatprep.subr.mxu0 0.0
    %67 = vmatpush1.msra.mxu0 0.0
    %68 = vmatprep.subr.mxu0 0.0
    %69 = vmatpush1.msra.mxu0 0.0
    %70 = vmatprep.subr.mxu0 0.0
    %71 = vmatpush1.msra.mxu0 0.0
    %72 = vmatprep.subr.mxu0 0.0
    %73 = vmatpush1.msra.mxu0 0.0
    %74 = vmatprep.subr.mxu0 0.0
    %75 = vmatpush1.msra.mxu0 0.0
    %76 = vmatprep.subr.mxu0 0.0
    %77 = vmatpush1.msra.mxu0 0.0
    %78 = vmatprep.subr.mxu0 0.0
    %79 = vmatpush1.msra.mxu0 0.0
    %80 = vmatprep.subr.mxu0 0.0
    %81 = vmatpush1.msra.mxu0 0.0
    %82 = vmatprep.subr.mxu0 0.0
    %83 = vmatpush1.msra.mxu0 %v42
    %84 = vmatprep.subr.mxu0 0.0
    %85 = vmatpush1.msra.mxu0 %v41
    %86 = vmatprep.subr.mxu0 0.0
    %87 = vmatpush2.msra.mxu0 0.0
    %88 = vmatprep.subr.mxu0 0.0
    %89 = vmatpush2.msra.mxu0 0.0
    %90 = vmatprep.subr.mxu0 0.0
    %91 = vmatpush2.msra.mxu0 0.0
    %92 = vmatprep.subr.mxu0 0.0
    %93 = vmatpush2.msra.mxu0 0.0
    %94 = vmatprep.subr.mxu0 0.0
    %95 = vmatpush2.msra.mxu0 0.0
    %96 = vmatprep.subr.mxu0 0.0
    %97 = vmatpush2.msra.mxu0 0.0
    %98 = vmatprep.subr.mxu0 0.0
    %99 = vmatpush2.msra.mxu0 0.0
    %100 = vmatprep.subr.mxu0 0.0
    %101 = vmatpush2.msra.mxu0 0.0
    %102 = vmatprep.subr.mxu0 0.0
    %103 = vmatpush2.msra.mxu0 0.0
    %104 = vmatprep.subr.mxu0 0.0
    %105 = vmatpush2.msra.mxu0 0.0
    %106 = vmatprep.subr.mxu0 0.0
    %107 = vmatpush2.msra.mxu0 0.0
    %108 = vmatprep.subr.mxu0 0.0
    %109 = vmatpush2.msra.mxu0 0.0
    %110 = vmatprep.subr.mxu0 0.0
    %111 = vmatpush2.msra.mxu0 0.0
    %112 = vmatprep.subr.mxu0 0.0
    %113 = vmatpush2.msra.mxu0 0.0
    %114 = vmatprep.subr.mxu0 0.0
    %115 = vmatpush2.msra.mxu0 0.0
    %116 = vmatprep.subr.mxu0 0.0
    %117 = vmatpush2.msra.mxu0 0.0
    %118 = vmatprep.mubr.f32.mxu0 0.0
    %119 = vmatmul.mubr.f32.gmra.mxu0 %v52
    %v120 = vpop.f32.mrf.mxu0
    %v121 = vadd.f32 %v48, %v120
    %v122 = vpop.f32.mrf.mxu0
    %123 = vdwg.mxu0
    %v124 = vmax.f32 %v121, 0.0
    %v125 = vld [vmem:[%s3] sm:$0xf]
    %v126 = vld [vmem:[%s4] sm:$0xf]
    %128 = vset.pattern.permute.xlu0 0
    %129 = vperm.xlu0 %128, %v126
    %v130 = vpop.permute.xlu0 %129
    %vm132 = vcmask 64512
    %v134 = vsel %vm132, %v125, 0
    %136 = vmatprep.subr.mxu0 0.0
    %137 = vmatpush1.msra.mxu0 0.0
    %138 = vmatprep.subr.mxu0 0.0
    %139 = vmatpush1.msra.mxu0 0.0
    %140 = vmatprep.subr.mxu0 0.0
    %141 = vmatpush1.msra.mxu0 0.0
    %142 = vmatprep.subr.mxu0 0.0
    %143 = vmatpush1.msra.mxu0 0.0
    %144 = vmatprep.subr.mxu0 0.0
    %145 = vmatpush1.msra.mxu0 0.0
    %146 = vmatprep.subr.mxu0 0.0
    %147 = vmatpush1.msra.mxu0 0.0
    %148 = vmatprep.subr.mxu0 0.0
    %149 = vmatpush1.msra.mxu0 0.0
    %150 = vmatprep.subr.mxu0 0.0
    %151 = vmatpush1.msra.mxu0 0.0
    %152 = vmatprep.subr.mxu0 0.0
    %153 = vmatpush1.msra.mxu0 0.0
    %154 = vmatprep.subr.mxu0 0.0
    %155 = vmatpush1.msra.mxu0 0.0
    %156 = vmatprep.subr.mxu0 0.0
    %157 = vmatpush1.msra.mxu0 0.0
    %158 = vmatprep.subr.mxu0 0.0
    %159 = vmatpush1.msra.mxu0 0.0
    %160 = vmatprep.subr.mxu0 0.0
    %161 = vmatpush1.msra.mxu0 0.0
    %162 = vmatprep.subr.mxu0 0.0
    %163 = vmatpush1.msra.mxu0 0.0
    %164 = vmatprep.subr.mxu0 0.0
    %165 = vmatpush1.msra.mxu0 0.0
    %166 = vmatprep.subr.mxu0 0.0
    %167 = vmatpush1.msra.mxu0 %v124
    %168 = vmatprep.subr.mxu0 0.0
    %169 = vmatpush2.msra.mxu0 0.0
    %170 = vmatprep.subr.mxu0 0.0
    %171 = vmatpush2.msra.mxu0 0.0
    %172 = vmatprep.subr.mxu0 0.0
    %173 = vmatpush2.msra.mxu0 0.0
    %174 = vmatprep.subr.mxu0 0.0
    %175 = vmatpush2.msra.mxu0 0.0
    %176 = vmatprep.subr.mxu0 0.0
    %177 = vmatpush2.msra.mxu0 0.0
    %178 = vmatprep.subr.mxu0 0.0
    %179 = vmatpush2.msra.mxu0 0.0
    %180 = vmatprep.subr.mxu0 0.0
    %181 = vmatpush2.msra.mxu0 0.0
    %182 = vmatprep.subr.mxu0 0.0
    %183 = vmatpush2.msra.mxu0 0.0
    %184 = vmatprep.subr.mxu0 0.0
    %185 = vmatpush2.msra.mxu0 0.0
    %186 = vmatprep.subr.mxu0 0.0
    %187 = vmatpush2.msra.mxu0 0.0
    %188 = vmatprep.subr.mxu0 0.0
    %189 = vmatpush2.msra.mxu0 0.0
    %190 = vmatprep.subr.mxu0 0.0
    %191 = vmatpush2.msra.mxu0 0.0
    %192 = vmatprep.subr.mxu0 0.0
    %193 = vmatpush2.msra.mxu0 0.0
    %194 = vmatprep.subr.mxu0 0.0
    %195 = vmatpush2.msra.mxu0 0.0
    %196 = vmatprep.subr.mxu0 0.0
    %197 = vmatpush2.msra.mxu0 0.0
    %198 = vmatprep.subr.mxu0 0.0
    %199 = vmatpush2.msra.mxu0 0.0
    %200 = vmatprep.mubr.f32.mxu0 0.0
    %201 = vmatmul.mubr.f32.gmra.mxu0 %v134
    %v202 = vpop.f32.mrf.mxu0
    %v203 = vadd.f32 %v130, %v202
    %v204 = vpop.f32.mrf.mxu0
    %205 = vdwg.mxu0
    %v206 = vmax.f32 %v203, 0.0
    %v207 = vld [vmem:[%s5] sm:$0x1]
    %v208 = vld [vmem:[#allocation2] sm:$0x1]
    %210 = vset.pattern.permute.xlu0 0
    %211 = vperm.xlu0 %210, %v208
    %v212 = vpop.permute.xlu0 %211
    %v214 = vlaneseq
    %v215 = vshrl.u32 %v214, 7
    %v216 = vsub.s32 0, %v215
    %v217 = vrot.slane %v212, %v216
    %vm218 = vcmask 31744
    %v220 = vsel %vm218, %v207, 0
    %vm222 = vcmask 1043456
    %v224 = vsel %vm222, %v206, 0
    %226 = vmatprep.subr.mxu0 0.0
    %227 = vmatpush1.msra.mxu0 0.0
    %228 = vmatprep.subr.mxu0 0.0
    %229 = vmatpush1.msra.mxu0 0.0
    %230 = vmatprep.subr.mxu0 0.0
    %231 = vmatpush1.msra.mxu0 0.0
    %232 = vmatprep.subr.mxu0 0.0
    %233 = vmatpush1.msra.mxu0 0.0
    %234 = vmatprep.subr.mxu0 0.0
    %235 = vmatpush1.msra.mxu0 0.0
    %236 = vmatprep.subr.mxu0 0.0
    %237 = vmatpush1.msra.mxu0 0.0
    %238 = vmatprep.subr.mxu0 0.0
    %239 = vmatpush1.msra.mxu0 0.0
    %240 = vmatprep.subr.mxu0 0.0
    %241 = vmatpush1.msra.mxu0 0.0
    %242 = vmatprep.subr.mxu0 0.0
    %243 = vmatpush1.msra.mxu0 0.0
    %244 = vmatprep.subr.mxu0 0.0
    %245 = vmatpush1.msra.mxu0 0.0
    %246 = vmatprep.subr.mxu0 0.0
    %247 = vmatpush1.msra.mxu0 0.0
    %248 = vmatprep.subr.mxu0 0.0
    %249 = vmatpush1.msra.mxu0 0.0
    %250 = vmatprep.subr.mxu0 0.0
    %251 = vmatpush1.msra.mxu0 0.0
    %252 = vmatprep.subr.mxu0 0.0
    %253 = vmatpush1.msra.mxu0 0.0
    %254 = vmatprep.subr.mxu0 0.0
    %255 = vmatpush1.msra.mxu0 0.0
    %256 = vmatprep.subr.mxu0 0.0
    %257 = vmatpush1.msra.mxu0 %v224
    %258 = vmatprep.subr.mxu0 0.0
    %259 = vmatpush2.msra.mxu0 0.0
    %260 = vmatprep.subr.mxu0 0.0
    %261 = vmatpush2.msra.mxu0 0.0
    %262 = vmatprep.subr.mxu0 0.0
    %263 = vmatpush2.msra.mxu0 0.0
    %264 = vmatprep.subr.mxu0 0.0
    %265 = vmatpush2.msra.mxu0 0.0
    %266 = vmatprep.subr.mxu0 0.0
    %267 = vmatpush2.msra.mxu0 0.0
    %268 = vmatprep.subr.mxu0 0.0
    %269 = vmatpush2.msra.mxu0 0.0
    %270 = vmatprep.subr.mxu0 0.0
    %271 = vmatpush2.msra.mxu0 0.0
    %272 = vmatprep.subr.mxu0 0.0
    %273 = vmatpush2.msra.mxu0 0.0
    %274 = vmatprep.subr.mxu0 0.0
    %275 = vmatpush2.msra.mxu0 0.0
    %276 = vmatprep.subr.mxu0 0.0
    %277 = vmatpush2.msra.mxu0 0.0
    %278 = vmatprep.subr.mxu0 0.0
    %279 = vmatpush2.msra.mxu0 0.0
    %280 = vmatprep.subr.mxu0 0.0
    %281 = vmatpush2.msra.mxu0 0.0
    %282 = vmatprep.subr.mxu0 0.0
    %283 = vmatpush2.msra.mxu0 0.0
    %284 = vmatprep.subr.mxu0 0.0
    %285 = vmatpush2.msra.mxu0 0.0
    %286 = vmatprep.subr.mxu0 0.0
    %287 = vmatpush2.msra.mxu0 0.0
    %288 = vmatprep.subr.mxu0 0.0
    %289 = vmatpush2.msra.mxu0 0.0
    %290 = vmatprep.mubr.f32.mxu0 0.0
    %291 = vmatmul.mubr.f32.gmra.mxu0 %v220
    %v292 = vpop.f32.mrf.mxu0
    %v293 = vadd.f32 %v217, %v292
    %v294 = vpop.f32.mrf.mxu0
    %295 = vdwg.mxu0
    %v296 = vxor.u32 %v293, 2147483648
    %v297 = vmul.f32 %v296, 1.442695
    %v298 = vpow.pop %v297
    %v299 = vadd.f32 %v298, 1.0
    %v300 = vrcp.pop %v299
    %v301 = vmul.f32 1.0, %v300
    %302 = vst [vmem:[#allocation6] sm:$0x1] %v301
    // Predicated region
    $region34: #{tpu_custom_call.1} parent=1 // pred_check
      _
    $region35: #{tpu_custom_call.1} parent=1 // pred_check_branch
      %304 = sbr.rel (0) target = $region37
    $region36: #{tpu_custom_call.1} parent=1 // pred_region
      %s306 = ssub.s32 16, 16
      %307 = vsyncadd [#allocation5], %s306
      %s309 = sshll.u32 [#allocation6], 4
      %s310 = int_to_ptr.vmem [resolvable:$true] %s309
      %312 = dma.vmem_to_hbm [thread:$0]  %s310, 16, %s7, [#allocation5]
    $region37: #{tpu_custom_call.1} parent=1 // pred_fallthru
      _
    // Predicated region
    $region38: #{tpu_custom_call.1} parent=1 // pred_check
      _
    $region39: #{tpu_custom_call.1} parent=1 // pred_check_branch
      %314 = sbr.rel (0) target = $region41
    $region40: #{tpu_custom_call.1} parent=1 // pred_region
      %315 = dma.done [#allocation5], 16
    $region41: #{tpu_custom_call.1} parent=1 // pred_fallthru
      _
    %316 = vsyncpa [#allocation4], 1
    %317 = vsyncpa [#allocation5], 1

</llo_original>
